<compile_context>
chip_gen: v5e
topology: v5e:2x2
jax: 0.10.0
libtpu: 0.0.40
codegen_flags: <defaults>
</compile_context>

<pallas_src>
import jax
import jax.numpy as jnp
from jax.experimental import pallas as pl
from jax.experimental.pallas import tpu as pltpu

NEG_SLOPE = 0.01   # torch.nn.LeakyReLU default negative_slope
LANES = 128        # TPU lane width == slab column width
ALPHA_COL = 126    # x-slab column carrying alpha[batch]
MASK_COL = 127     # x-slab column carrying x[:, 9] (the output mask)


# --------------------------------------------------------------------------
# Kernel
# --------------------------------------------------------------------------
def make_sage_kernel(hidden, out_ch, rows):
    """rows = row offsets of each weight block inside the packed weight slab."""
    row_pre, row_c1, row_hh1, row_c2, row_hh2, row_c3, row_oh, row_h1 = rows

    def kernel(x_ref, a_ref, w_ref, b_ref, out_ref):
        x = x_ref[...]          # [N,128] f32 : features | ... | alpha | mask
        a_bf = a_ref[...]       # [N,N]   bf16 row-normalized adjacency
        b = b_ref[...]          # [8,128] f32 packed biases (+ final scalars)

        def mm(h, row0):
            # h[N,K] (f32) @ w_slab[row0:row0+K, :128] (bf16) -> [N,128] f32.
            w = w_ref[row0:row0 + h.shape[1], :]
            return jnp.dot(h.astype(jnp.bfloat16), w,
                           preferred_element_type=jnp.float32)

        def sage_conv(h, row0, width):
            # PyG SAGEConv: lin_l(mean_j h_j) + lin_r(h_i), reassociated as
            # A @ (H@Wl) + H@Wr, with [Wl|Wr] fused into one matmul.
            t = mm(h, row0)                                   # [N,128]
            t_l = t[:, :width].astype(jnp.bfloat16)           # H @ Wl
            agg = jnp.dot(a_bf, t_l, preferred_element_type=jnp.float32)
            return agg + t[:, width:2 * width]                # + H @ Wr

        def leaky(h):
            return jnp.where(h > 0, h, NEG_SLOPE * h)

        h = mm(x, row_pre)[:, :hidden] + b[0:1, :hidden]            # prelin
        h = sage_conv(h, row_c1, hidden) + b[1:2, :hidden]          # conv1
        h = jnp.maximum(h, 0.0)
        h = leaky(mm(h, row_hh1)[:, :hidden] + b[2:3, :hidden])     # lin_hh1 (+dropout noop)
        h = sage_conv(h, row_c2, hidden) + b[3:4, :hidden]          # conv2
        h = jnp.maximum(h, 0.0)
        h = leaky(mm(h, row_hh2)[:, :hidden] + b[4:5, :hidden])     # lin_hh2
        h = sage_conv(h, row_c3, out_ch) + b[5:6, :out_ch]          # conv3
        h = jnp.maximum(h, 0.0)
        h = leaky(mm(h, row_oh)[:, :hidden] + b[6:7, :hidden])      # lin_oh

        # lin_h1 on cat([h, alpha]): the h-part weight sits in column 0 of its
        # slab block; the alpha weight and bias are scalars in bias row 7.
        # Output is written lane-dense across 128 columns; wrapper keeps col 0.
        alpha_col = x[:, ALPHA_COL:ALPHA_COL + 1]
        mask_col = x[:, MASK_COL:MASK_COL + 1]
        z = mm(h, row_h1)                                           # col 0 = h @ wh1
        z = z + alpha_col * b[7:8, 0:1] + b[7:8, 1:2]
        out_ref[...] = 10.0 * jax.nn.sigmoid(z) * mask_col

    return kernel


# --------------------------------------------------------------------------
# Parameter generation / packing
# --------------------------------------------------------------------------
def init_params(key, in_channels, hidden, out_channels):
    """Deterministic synthetic parameters, stored pre-transposed as [in, out]."""
    ks = iter(jax.random.split(key, 32))

    def w(shape):
        return (0.1 * jax.random.normal(next(ks), shape)).astype(jnp.float32)

    params = [
        w((in_channels, hidden)), w((1, hidden)),                    # prelin
        w((hidden, hidden)), w((hidden, hidden)), w((1, hidden)),    # conv1 (lin_l, lin_r, bias)
        w((hidden, hidden)), w((1, hidden)),                         # lin_hh1
        w((hidden, hidden)), w((hidden, hidden)), w((1, hidden)),    # conv2
        w((hidden, hidden)), w((1, hidden)),                         # lin_hh2
        w((hidden, out_channels)), w((hidden, out_channels)), w((1, out_channels)),  # conv3
        w((out_channels, hidden)), w((1, hidden)),                   # lin_oh
        w((hidden, 1)),                                              # lin_h1 weight on h
        w((2,)),                                                     # [alpha weight, bias] of lin_h1
    ]
    return params


def compute_row_layout(hidden, out_ch):
    """Row offsets of the 8 matmul weight blocks inside the packed slab."""
    ks = (LANES, hidden, hidden, hidden, hidden, hidden, out_ch, hidden)
    rows, r = [], 0
    for k in ks:
        assert k % 8 == 0, "matmul K dims must be sublane-aligned"
        rows.append(r)
        r += k
    return tuple(rows), r


def pack_params(params, c_in, hidden, out_ch):
    (wpre, bpre, wl1, wr1, bl1, whh1, bhh1, wl2, wr2, bl2, whh2, bhh2,
     wl3, wr3, bl3, woh, boh, wh1, wab) = params
    assert c_in <= ALPHA_COL and 2 * hidden <= LANES and 2 * out_ch <= LANES
    rows, total_rows = compute_row_layout(hidden, out_ch)

    def block(w, k_rows):
        blk = jnp.zeros((k_rows, LANES), jnp.float32)
        return blk.at[:w.shape[0], :w.shape[1]].set(w)

    # Single bf16 weight slab: every block is 128 lanes wide, zero padded.
    w_slab = jnp.concatenate([
        block(wpre, LANES),                                   # prelin (K = 128-wide x slab)
        block(jnp.concatenate([wl1, wr1], axis=1), hidden),   # conv1  [Wl|Wr]
        block(whh1, hidden),                                  # lin_hh1
        block(jnp.concatenate([wl2, wr2], axis=1), hidden),   # conv2  [Wl|Wr]
        block(whh2, hidden),                                  # lin_hh2
        block(jnp.concatenate([wl3, wr3], axis=1), hidden),   # conv3  [Wl|Wr]
        block(woh, out_ch),                                   # lin_oh
        block(wh1, hidden),                                   # lin_h1 (col 0 only)
    ], axis=0).astype(jnp.bfloat16)
    assert w_slab.shape == (total_rows, LANES)

    # Single f32 bias slab (one row per bias, final scalars in row 7).
    b_slab = jnp.zeros((8, LANES), jnp.float32)
    for i, (bias, width) in enumerate([
            (bpre, hidden), (bl1, hidden), (bhh1, hidden), (bl2, hidden),
            (bhh2, hidden), (bl3, out_ch), (boh, hidden)]):
        b_slab = b_slab.at[i, :width].set(bias.reshape(-1))
    b_slab = b_slab.at[7, 0:2].set(wab)    # [alpha weight, lin_h1 bias]
    return w_slab, b_slab, rows


# --------------------------------------------------------------------------
# Wrapper
# --------------------------------------------------------------------------
def sage_model_forward(x, alpha, edge_index, batch, params):
    """Matches SAGE_model2test.forward in eval mode.
    Returns (out [N,1], fixed_feature [N,10])."""
    n, c_in = x.shape
    hidden = params[0].shape[1]
    out_ch = params[12].shape[1]

    src, dst = edge_index[0], edge_index[1]
    # Dense mean-aggregation operator: A[dst, src] = 1 / in_degree(dst).
    # TODO(synk): for realistic graph sizes replace the dense NxN adjacency
    # with an edge-list segment-sum (PrefetchScalarGridSpec) or row-tile A
    # with a "parallel" grid axis (mandatory under v7x's 64 MiB VMEM).
    adj = jnp.zeros((n, n), jnp.float32).at[dst, src].add(1.0)
    a_norm = (adj / jnp.maximum(adj.sum(axis=1, keepdims=True), 1.0)).astype(jnp.bfloat16)

    x = x.astype(jnp.float32)
    fixed_feature = x[:, :10]

    # Lane-dense input slab: features | zeros | alpha | mask.
    x_slab = jnp.zeros((n, LANES), jnp.float32)
    x_slab = x_slab.at[:, :c_in].set(x)
    x_slab = x_slab.at[:, ALPHA_COL].set(alpha[batch].astype(jnp.float32))
    x_slab = x_slab.at[:, MASK_COL].set(x[:, 9])

    w_slab, b_slab, rows = pack_params(params, c_in, hidden, out_ch)

    vmem = pl.BlockSpec(memory_space=pltpu.MemorySpace.VMEM)
    out128 = pl.pallas_call(
        make_sage_kernel(hidden, out_ch, rows),
        out_shape=jax.ShapeDtypeStruct((n, LANES), jnp.float32),
        in_specs=[vmem, vmem, vmem, vmem],
        out_specs=vmem,
    )(x_slab, a_norm, w_slab, b_slab)
    return out128[:, :1], fixed_feature


# --------------------------------------------------------------------------
# Pure-JAX reference (mirrors the kernel's bf16-operand / f32-accum matmuls,
# but uses the ORIGINAL (A@H)@Wl association to validate the reassociation).
# --------------------------------------------------------------------------
def reference_forward(x, alpha, edge_index, batch, params):
    (wpre, bpre, wl1, wr1, bl1, whh1, bhh1, wl2, wr2, bl2, whh2, bhh2,
     wl3, wr3, bl3, woh, boh, wh1, wab) = params
    n = x.shape[0]
    src, dst = edge_index[0], edge_index[1]
    adj = jnp.zeros((n, n), jnp.float32).at[dst, src].add(1.0)
    a_norm = adj / jnp.maximum(adj.sum(1, keepdims=True), 1.0)
    mask = x[:, 9].reshape(-1, 1)
    alpha_node = alpha[batch].astype(jnp.float32).reshape(-1, 1)

    def bdot(p, q):
        return jnp.dot(p.astype(jnp.bfloat16), q.astype(jnp.bfloat16),
                       preferred_element_type=jnp.float32)

    def sage(h, wl, wr, bl):
        return bdot(bdot(a_norm, h), wl) + bl + bdot(h, wr)

    lr = lambda h: jnp.where(h > 0, h, NEG_SLOPE * h)
    h = bdot(x, wpre) + bpre
    h = jnp.maximum(sage(h, wl1, wr1, bl1), 0.0)
    h = lr(bdot(h, whh1) + bhh1)
    h = jnp.maximum(sage(h, wl2, wr2, bl2), 0.0)
    h = lr(bdot(h, whh2) + bhh2)
    h = jnp.maximum(sage(h, wl3, wr3, bl3), 0.0)
    h = lr(bdot(h, woh) + boh)
    z = bdot(h, wh1) + alpha_node * wab[0] + wab[1]
    return 10.0 * jax.nn.sigmoid(z) * mask, x[:, :10]


if __name__ == "__main__":
    N, C_IN, HIDDEN, OUT = 64, 16, 32, 16
    NUM_EDGES, NUM_GRAPHS = 256, 4

    key = jax.random.PRNGKey(0)
    kx, ke, ka, kb, kp = jax.random.split(key, 5)

    x = jax.random.normal(kx, (N, C_IN), jnp.float32)
    edge_index = jax.random.randint(ke, (2, NUM_EDGES), 0, N, jnp.int32)
    alpha = jax.random.uniform(ka, (NUM_GRAPHS,), jnp.float32)
    batch = jnp.sort(jax.random.randint(kb, (N,), 0, NUM_GRAPHS, jnp.int32))

    params = init_params(kp, C_IN, HIDDEN, OUT)

    out, fixed_feature = sage_model_forward(x, alpha, edge_index, batch, params)
    out = jax.block_until_ready(out)
    fixed_feature = jax.block_until_ready(fixed_feature)

    ref_out, ref_fixed = reference_forward(x, alpha, edge_index, batch, params)
    assert out.shape == (N, 1) and fixed_feature.shape == (N, 10)
    # Tolerance accounts for bf16 MXU operands + the reassociated conv matmuls
    # (reference uses the original association); expected drift is ~1e-3.
    assert jnp.allclose(out, ref_out, atol=2e-2, rtol=2e-2), (
        float(jnp.max(jnp.abs(out - ref_out))))
    assert jnp.allclose(fixed_feature, ref_fixed)

    print("KERNEL_OK")
</pallas_src>

<mosaic_0001>
module attributes {stable_mosaic.version = 11 : i64} {
  func.func @kernel(%arg0: memref<64x128xf32, #tpu.memory_space<vmem>>, %arg1: memref<64x64xbf16, #tpu.memory_space<vmem>>, %arg2: memref<336x128xbf16, #tpu.memory_space<vmem>>, %arg3: memref<8x128xf32, #tpu.memory_space<vmem>>, %arg4: memref<64x128xf32, #tpu.memory_space<vmem>>) attributes {dimension_semantics = [], scalar_prefetch = 0 : i64, scratch_operands = 0 : i64, tpu.core_type = #tpu.core_type<tc>} {
    %c0 = arith.constant 0 : index
    %c0_0 = arith.constant 0 : index
    %0 = vector.load %arg0[%c0, %c0_0] : memref<64x128xf32, #tpu.memory_space<vmem>>, vector<64x128xf32>
    %c0_1 = arith.constant 0 : index
    %c0_2 = arith.constant 0 : index
    %1 = vector.load %arg1[%c0_1, %c0_2] : memref<64x64xbf16, #tpu.memory_space<vmem>>, vector<64x64xbf16>
    %c0_3 = arith.constant 0 : index
    %c0_4 = arith.constant 0 : index
    %2 = vector.load %arg3[%c0_3, %c0_4] : memref<8x128xf32, #tpu.memory_space<vmem>>, vector<8x128xf32>
    %c0_5 = arith.constant 0 : index
    %c0_6 = arith.constant 0 : index
    %3 = vector.load %arg2[%c0_5, %c0_6] : memref<336x128xbf16, #tpu.memory_space<vmem>>, vector<128x128xbf16>
    %4 = arith.truncf %0 : vector<64x128xf32> to vector<64x128xbf16>
    %cst = arith.constant dense<0.000000e+00> : vector<64x128xf32>
    %5 = tpu.matmul %4, %3, %cst {dimension_numbers = #tpu.dot_dimension_numbers<[1], [0], [0], [1], [0, 0, 1, 1], [], []>} : vector<64x128xbf16>, vector<128x128xbf16>, vector<64x128xf32> -> vector<64x128xf32>
    %6 = vector.extract_strided_slice %5 {offsets = [0, 0], sizes = [64, 32], strides = [1, 1]} : vector<64x128xf32> to vector<64x32xf32>
    %7 = vector.extract_strided_slice %2 {offsets = [0, 0], sizes = [1, 32], strides = [1, 1]} : vector<8x128xf32> to vector<1x32xf32>
    %8 = vector.broadcast %7 : vector<1x32xf32> to vector<64x32xf32>
    %9 = arith.addf %6, %8 : vector<64x32xf32>
    %c128 = arith.constant 128 : index
    %c0_7 = arith.constant 0 : index
    %10 = vector.load %arg2[%c128, %c0_7] : memref<336x128xbf16, #tpu.memory_space<vmem>>, vector<32x128xbf16>
    %11 = arith.truncf %9 : vector<64x32xf32> to vector<64x32xbf16>
    %cst_8 = arith.constant dense<0.000000e+00> : vector<64x128xf32>
    %12 = tpu.matmul %11, %10, %cst_8 {dimension_numbers = #tpu.dot_dimension_numbers<[1], [0], [0], [1], [0, 0, 1, 1], [], []>} : vector<64x32xbf16>, vector<32x128xbf16>, vector<64x128xf32> -> vector<64x128xf32>
    %13 = vector.extract_strided_slice %12 {offsets = [0, 0], sizes = [64, 32], strides = [1, 1]} : vector<64x128xf32> to vector<64x32xf32>
    %14 = arith.truncf %13 : vector<64x32xf32> to vector<64x32xbf16>
    %cst_9 = arith.constant dense<0.000000e+00> : vector<64x32xf32>
    %15 = tpu.matmul %1, %14, %cst_9 {dimension_numbers = #tpu.dot_dimension_numbers<[1], [0], [0], [1], [0, 0, 1, 1], [], []>} : vector<64x64xbf16>, vector<64x32xbf16>, vector<64x32xf32> -> vector<64x32xf32>
    %16 = vector.extract_strided_slice %12 {offsets = [0, 32], sizes = [64, 32], strides = [1, 1]} : vector<64x128xf32> to vector<64x32xf32>
    %17 = arith.addf %15, %16 : vector<64x32xf32>
    %18 = vector.extract_strided_slice %2 {offsets = [1, 0], sizes = [1, 32], strides = [1, 1]} : vector<8x128xf32> to vector<1x32xf32>
    %19 = vector.broadcast %18 : vector<1x32xf32> to vector<64x32xf32>
    %20 = arith.addf %17, %19 : vector<64x32xf32>
    %cst_10 = arith.constant 0.000000e+00 : f32
    %21 = vector.broadcast %cst_10 : f32 to vector<64x32xf32>
    %22 = arith.maximumf %20, %21 : vector<64x32xf32>
    %c160 = arith.constant 160 : index
    %c0_11 = arith.constant 0 : index
    %23 = vector.load %arg2[%c160, %c0_11] : memref<336x128xbf16, #tpu.memory_space<vmem>>, vector<32x128xbf16>
    %24 = arith.truncf %22 : vector<64x32xf32> to vector<64x32xbf16>
    %cst_12 = arith.constant dense<0.000000e+00> : vector<64x128xf32>
    %25 = tpu.matmul %24, %23, %cst_12 {dimension_numbers = #tpu.dot_dimension_numbers<[1], [0], [0], [1], [0, 0, 1, 1], [], []>} : vector<64x32xbf16>, vector<32x128xbf16>, vector<64x128xf32> -> vector<64x128xf32>
    %26 = vector.extract_strided_slice %25 {offsets = [0, 0], sizes = [64, 32], strides = [1, 1]} : vector<64x128xf32> to vector<64x32xf32>
    %27 = vector.extract_strided_slice %2 {offsets = [2, 0], sizes = [1, 32], strides = [1, 1]} : vector<8x128xf32> to vector<1x32xf32>
    %28 = vector.broadcast %27 : vector<1x32xf32> to vector<64x32xf32>
    %29 = arith.addf %26, %28 : vector<64x32xf32>
    %cst_13 = arith.constant 0.000000e+00 : f32
    %30 = vector.broadcast %cst_13 : f32 to vector<64x32xf32>
    %31 = arith.cmpf ogt, %29, %30 : vector<64x32xf32>
    %cst_14 = arith.constant 0.00999999977 : f32
    %32 = vector.broadcast %cst_14 : f32 to vector<64x32xf32>
    %33 = arith.mulf %32, %29 : vector<64x32xf32>
    %34 = arith.select %31, %29, %33 : vector<64x32xi1>, vector<64x32xf32>
    %c192 = arith.constant 192 : index
    %c0_15 = arith.constant 0 : index
    %35 = vector.load %arg2[%c192, %c0_15] : memref<336x128xbf16, #tpu.memory_space<vmem>>, vector<32x128xbf16>
    %36 = arith.truncf %34 : vector<64x32xf32> to vector<64x32xbf16>
    %cst_16 = arith.constant dense<0.000000e+00> : vector<64x128xf32>
    %37 = tpu.matmul %36, %35, %cst_16 {dimension_numbers = #tpu.dot_dimension_numbers<[1], [0], [0], [1], [0, 0, 1, 1], [], []>} : vector<64x32xbf16>, vector<32x128xbf16>, vector<64x128xf32> -> vector<64x128xf32>
    %38 = vector.extract_strided_slice %37 {offsets = [0, 0], sizes = [64, 32], strides = [1, 1]} : vector<64x128xf32> to vector<64x32xf32>
    %39 = arith.truncf %38 : vector<64x32xf32> to vector<64x32xbf16>
    %cst_17 = arith.constant dense<0.000000e+00> : vector<64x32xf32>
    %40 = tpu.matmul %1, %39, %cst_17 {dimension_numbers = #tpu.dot_dimension_numbers<[1], [0], [0], [1], [0, 0, 1, 1], [], []>} : vector<64x64xbf16>, vector<64x32xbf16>, vector<64x32xf32> -> vector<64x32xf32>
    %41 = vector.extract_strided_slice %37 {offsets = [0, 32], sizes = [64, 32], strides = [1, 1]} : vector<64x128xf32> to vector<64x32xf32>
    %42 = arith.addf %40, %41 : vector<64x32xf32>
    %43 = vector.extract_strided_slice %2 {offsets = [3, 0], sizes = [1, 32], strides = [1, 1]} : vector<8x128xf32> to vector<1x32xf32>
    %44 = vector.broadcast %43 : vector<1x32xf32> to vector<64x32xf32>
    %45 = arith.addf %42, %44 : vector<64x32xf32>
    %cst_18 = arith.constant 0.000000e+00 : f32
    %46 = vector.broadcast %cst_18 : f32 to vector<64x32xf32>
    %47 = arith.maximumf %45, %46 : vector<64x32xf32>
    %c224 = arith.constant 224 : index
    %c0_19 = arith.constant 0 : index
    %48 = vector.load %arg2[%c224, %c0_19] : memref<336x128xbf16, #tpu.memory_space<vmem>>, vector<32x128xbf16>
    %49 = arith.truncf %47 : vector<64x32xf32> to vector<64x32xbf16>
    %cst_20 = arith.constant dense<0.000000e+00> : vector<64x128xf32>
    %50 = tpu.matmul %49, %48, %cst_20 {dimension_numbers = #tpu.dot_dimension_numbers<[1], [0], [0], [1], [0, 0, 1, 1], [], []>} : vector<64x32xbf16>, vector<32x128xbf16>, vector<64x128xf32> -> vector<64x128xf32>
    %51 = vector.extract_strided_slice %50 {offsets = [0, 0], sizes = [64, 32], strides = [1, 1]} : vector<64x128xf32> to vector<64x32xf32>
    %52 = vector.extract_strided_slice %2 {offsets = [4, 0], sizes = [1, 32], strides = [1, 1]} : vector<8x128xf32> to vector<1x32xf32>
    %53 = vector.broadcast %52 : vector<1x32xf32> to vector<64x32xf32>
    %54 = arith.addf %51, %53 : vector<64x32xf32>
    %cst_21 = arith.constant 0.000000e+00 : f32
    %55 = vector.broadcast %cst_21 : f32 to vector<64x32xf32>
    %56 = arith.cmpf ogt, %54, %55 : vector<64x32xf32>
    %cst_22 = arith.constant 0.00999999977 : f32
    %57 = vector.broadcast %cst_22 : f32 to vector<64x32xf32>
    %58 = arith.mulf %57, %54 : vector<64x32xf32>
    %59 = arith.select %56, %54, %58 : vector<64x32xi1>, vector<64x32xf32>
    %c256 = arith.constant 256 : index
    %c0_23 = arith.constant 0 : index
    %60 = vector.load %arg2[%c256, %c0_23] : memref<336x128xbf16, #tpu.memory_space<vmem>>, vector<32x128xbf16>
    %61 = arith.truncf %59 : vector<64x32xf32> to vector<64x32xbf16>
    %cst_24 = arith.constant dense<0.000000e+00> : vector<64x128xf32>
    %62 = tpu.matmul %61, %60, %cst_24 {dimension_numbers = #tpu.dot_dimension_numbers<[1], [0], [0], [1], [0, 0, 1, 1], [], []>} : vector<64x32xbf16>, vector<32x128xbf16>, vector<64x128xf32> -> vector<64x128xf32>
    %63 = vector.extract_strided_slice %62 {offsets = [0, 0], sizes = [64, 16], strides = [1, 1]} : vector<64x128xf32> to vector<64x16xf32>
    %64 = arith.truncf %63 : vector<64x16xf32> to vector<64x16xbf16>
    %cst_25 = arith.constant dense<0.000000e+00> : vector<64x16xf32>
    %65 = tpu.matmul %1, %64, %cst_25 {dimension_numbers = #tpu.dot_dimension_numbers<[1], [0], [0], [1], [0, 0, 1, 1], [], []>} : vector<64x64xbf16>, vector<64x16xbf16>, vector<64x16xf32> -> vector<64x16xf32>
    %66 = vector.extract_strided_slice %62 {offsets = [0, 16], sizes = [64, 16], strides = [1, 1]} : vector<64x128xf32> to vector<64x16xf32>
    %67 = arith.addf %65, %66 : vector<64x16xf32>
    %68 = vector.extract_strided_slice %2 {offsets = [5, 0], sizes = [1, 16], strides = [1, 1]} : vector<8x128xf32> to vector<1x16xf32>
    %69 = vector.broadcast %68 : vector<1x16xf32> to vector<64x16xf32>
    %70 = arith.addf %67, %69 : vector<64x16xf32>
    %cst_26 = arith.constant 0.000000e+00 : f32
    %71 = vector.broadcast %cst_26 : f32 to vector<64x16xf32>
    %72 = arith.maximumf %70, %71 : vector<64x16xf32>
    %c288 = arith.constant 288 : index
    %c0_27 = arith.constant 0 : index
    %73 = vector.load %arg2[%c288, %c0_27] : memref<336x128xbf16, #tpu.memory_space<vmem>>, vector<16x128xbf16>
    %74 = arith.truncf %72 : vector<64x16xf32> to vector<64x16xbf16>
    %cst_28 = arith.constant dense<0.000000e+00> : vector<64x128xf32>
    %75 = tpu.matmul %74, %73, %cst_28 {dimension_numbers = #tpu.dot_dimension_numbers<[1], [0], [0], [1], [0, 0, 1, 1], [], []>} : vector<64x16xbf16>, vector<16x128xbf16>, vector<64x128xf32> -> vector<64x128xf32>
    %76 = vector.extract_strided_slice %75 {offsets = [0, 0], sizes = [64, 32], strides = [1, 1]} : vector<64x128xf32> to vector<64x32xf32>
    %77 = vector.extract_strided_slice %2 {offsets = [6, 0], sizes = [1, 32], strides = [1, 1]} : vector<8x128xf32> to vector<1x32xf32>
    %78 = vector.broadcast %77 : vector<1x32xf32> to vector<64x32xf32>
    %79 = arith.addf %76, %78 : vector<64x32xf32>
    %cst_29 = arith.constant 0.000000e+00 : f32
    %80 = vector.broadcast %cst_29 : f32 to vector<64x32xf32>
    %81 = arith.cmpf ogt, %79, %80 : vector<64x32xf32>
    %cst_30 = arith.constant 0.00999999977 : f32
    %82 = vector.broadcast %cst_30 : f32 to vector<64x32xf32>
    %83 = arith.mulf %82, %79 : vector<64x32xf32>
    %84 = arith.select %81, %79, %83 : vector<64x32xi1>, vector<64x32xf32>
    %85 = vector.extract_strided_slice %0 {offsets = [0, 126], sizes = [64, 1], strides = [1, 1]} : vector<64x128xf32> to vector<64x1xf32>
    %86 = vector.extract_strided_slice %0 {offsets = [0, 127], sizes = [64, 1], strides = [1, 1]} : vector<64x128xf32> to vector<64x1xf32>
    %c304 = arith.constant 304 : index
    %c0_31 = arith.constant 0 : index
    %87 = vector.load %arg2[%c304, %c0_31] : memref<336x128xbf16, #tpu.memory_space<vmem>>, vector<32x128xbf16>
    %88 = arith.truncf %84 : vector<64x32xf32> to vector<64x32xbf16>
    %cst_32 = arith.constant dense<0.000000e+00> : vector<64x128xf32>
    %89 = tpu.matmul %88, %87, %cst_32 {dimension_numbers = #tpu.dot_dimension_numbers<[1], [0], [0], [1], [0, 0, 1, 1], [], []>} : vector<64x32xbf16>, vector<32x128xbf16>, vector<64x128xf32> -> vector<64x128xf32>
    %90 = vector.extract_strided_slice %2 {offsets = [7, 0], sizes = [1, 1], strides = [1, 1]} : vector<8x128xf32> to vector<1x1xf32>
    %91 = vector.broadcast %90 : vector<1x1xf32> to vector<64x1xf32>
    %92 = arith.mulf %85, %91 : vector<64x1xf32>
    %93 = vector.broadcast %92 : vector<64x1xf32> to vector<64x128xf32>
    %94 = arith.addf %89, %93 : vector<64x128xf32>
    %95 = vector.extract_strided_slice %2 {offsets = [7, 1], sizes = [1, 1], strides = [1, 1]} : vector<8x128xf32> to vector<1x1xf32>
    %96 = vector.broadcast %95 : vector<1x1xf32> to vector<64x128xf32>
    %97 = arith.addf %94, %96 : vector<64x128xf32>
    %98 = arith.negf %97 : vector<64x128xf32>
    %99 = math.exp %98 : vector<64x128xf32>
    %cst_33 = arith.constant 1.000000e+00 : f32
    %100 = vector.broadcast %cst_33 : f32 to vector<64x128xf32>
    %101 = arith.addf %100, %99 : vector<64x128xf32>
    %102 = arith.divf %100, %101 : vector<64x128xf32>
    %cst_34 = arith.constant 1.000000e+01 : f32
    %103 = vector.broadcast %cst_34 : f32 to vector<64x128xf32>
    %104 = arith.mulf %103, %102 : vector<64x128xf32>
    %105 = vector.broadcast %86 : vector<64x1xf32> to vector<64x128xf32>
    %106 = arith.mulf %104, %105 : vector<64x128xf32>
    %c0_35 = arith.constant 0 : index
    %c0_36 = arith.constant 0 : index
    %107 = vector.load %arg4[%c0_35, %c0_36] : memref<64x128xf32, #tpu.memory_space<vmem>>, vector<64x128xf32>
    tpu.vector_store %arg4[%c0_35, %c0_36], %106 {strides = array<i32>} : memref<64x128xf32, #tpu.memory_space<vmem>>, vector<64x128xf32>,
    return
  }
}

</mosaic_0001>

<llo_original>
// kernel: tpu_custom_call.1
$region0: #{tpu_custom_call.1}
  #allocation0 [shape = 'u32[]', space=smem, size = 0x4, offset = 0x4, fixed_abs, tag = 'smem constant byte address 0x4 - core index']
  #allocation1 [shape = 'u32[72,128]{1,0:T(1,128)}', space=vmem, size = 0x9000, scoped, tag = 'internal scratch']
  %s0 = inlined_call_operand.hbm [shape: f32[64,128], index: 0, kind: input, shape index: {}]
  %s1 = inlined_call_operand.hbm [shape: bf16[64,64], index: 1, kind: input, shape index: {}]
  %s2 = inlined_call_operand.hbm [shape: bf16[336,128], index: 2, kind: input, shape index: {}]
  %s3 = inlined_call_operand.hbm [shape: f32[8,128], index: 3, kind: input, shape index: {}]
  %s4 = inlined_call_operand.hbm [shape: f32[64,128], index: 4, kind: output, shape index: {}]
  %s5 = sld [smem:[#allocation0]]
  $region42: #{tpu_custom_call.1} parent=0
    _
  %s7 = ssub.s32 1, %s5
  %s8 = scalar_select 0, %s7, %s5
  $region1: #{tpu_custom_call.1} parent=0
    #allocation2 [shape = 'u8[32768]{0}', space=vmem, size = 0x8000, scoped, tag = 'input window, operand 0, single buffered']
    #allocation3 [shape = 's32[1]{0}', space=sflag, size = 0x4, scoped, tag = 'scoped memory for tpu_custom_call.1']
    #allocation4 [shape = 's32[1]{0}', space=sflag, size = 0x4, scoped, tag = 'scoped memory for tpu_custom_call.1']
    #allocation5 [shape = 'u8[16384]{0}', space=vmem, size = 0x4000, scoped, tag = 'input window, operand 1, single buffered']
    #allocation6 [shape = 's32[1]{0}', space=sflag, size = 0x4, scoped, tag = 'scoped memory for tpu_custom_call.1']
    #allocation7 [shape = 'u8[86016]{0}', space=vmem, size = 0x15000, scoped, tag = 'input window, operand 2, single buffered']
    #allocation8 [shape = 'u8[4096]{0}', space=vmem, size = 0x1000, scoped, tag = 'input window, operand 3, single buffered']
    #allocation9 [shape = 's32[1]{0}', space=sflag, size = 0x4, scoped, tag = 'scoped memory for tpu_custom_call.1']
    #allocation10 [shape = 'u8[32768]{0}', space=vmem, size = 0x8000, scoped, tag = 'output window, operand 0, single buffered']
    %9 = vsyncpa [#allocation3], 0
    %10 = vsyncpa [#allocation6], 0
    %11 = vsyncpa [#allocation9], 0
    %12 = vsyncpa [#allocation4], 0
    // Predicated region
    $region2: #{tpu_custom_call.1} parent=1 // pred_check
      _
    $region3: #{tpu_custom_call.1} parent=1 // pred_check_branch
      %14 = sbr.rel (0) target = $region5
    $region4: #{tpu_custom_call.1} parent=1 // pred_region
      %16 = vsyncadd [#allocation3], 0
      %s17 = sshll.u32 %s0, 4
      %s18 = int_to_ptr.hbm [resolvable:$true] %s17
      %s19 = sshll.u32 [#allocation2], 4
      %s20 = int_to_ptr.vmem [resolvable:$true] %s19
      %25 = dma.hbm_to_vmem [thread:$0]  %s18, 1024, %s20, [#allocation3], 128, 128, 8
    $region5: #{tpu_custom_call.1} parent=1 // pred_fallthru
      _
    // Predicated region
    $region6: #{tpu_custom_call.1} parent=1 // pred_check
      _
    $region7: #{tpu_custom_call.1} parent=1 // pred_check_branch
      %27 = sbr.rel (0) target = $region9
    $region8: #{tpu_custom_call.1} parent=1 // pred_region
      %29 = vsyncadd [#allocation6], 0
      %s30 = sshll.u32 %s1, 4
      %s31 = int_to_ptr.hbm [resolvable:$true] %s30
      %s32 = sshll.u32 [#allocation5], 4
      %s33 = int_to_ptr.vmem [resolvable:$true] %s32
      %38 = dma.hbm_to_vmem [thread:$0]  %s31, 512, %s33, [#allocation6], 64, 64, 4
    $region9: #{tpu_custom_call.1} parent=1 // pred_fallthru
      _
    // Predicated region
    $region10: #{tpu_custom_call.1} parent=1 // pred_check
      _
    $region11: #{tpu_custom_call.1} parent=1 // pred_check_branch
      %40 = sbr.rel (0) target = $region13
    $region12: #{tpu_custom_call.1} parent=1 // pred_region
      %42 = vsyncadd [#allocation6], 0
      %s43 = sshll.u32 %s2, 4
      %s44 = int_to_ptr.hbm [resolvable:$true] %s43
      %s45 = sshll.u32 [#allocation7], 4
      %s46 = int_to_ptr.vmem [resolvable:$true] %s45
      %51 = dma.hbm_to_vmem [thread:$0]  %s44, 2688, %s46, [#allocation6], 64, 64, 4
    $region13: #{tpu_custom_call.1} parent=1 // pred_fallthru
      _
    // Predicated region
    $region14: #{tpu_custom_call.1} parent=1 // pred_check
      _
    $region15: #{tpu_custom_call.1} parent=1 // pred_check_branch
      %53 = sbr.rel (0) target = $region17
    $region16: #{tpu_custom_call.1} parent=1 // pred_region
      %55 = vsyncadd [#allocation9], 0
      %s57 = sshll.u32 %s3, 4
      %s58 = int_to_ptr.hbm [resolvable:$true] %s57
      %s59 = sshll.u32 [#allocation8], 4
      %s60 = int_to_ptr.vmem [resolvable:$true] %s59
      %62 = dma.hbm_to_vmem [thread:$0]  %s58, 128, %s60, [#allocation9]
    $region17: #{tpu_custom_call.1} parent=1 // pred_fallthru
      _
    // Predicated region
    $region18: #{tpu_custom_call.1} parent=1 // pred_check
      _
    $region19: #{tpu_custom_call.1} parent=1 // pred_check_branch
      %64 = sbr.rel (0) target = $region21
    $region20: #{tpu_custom_call.1} parent=1 // pred_region
      %66 = dma.done [#allocation3], 1024
    $region21: #{tpu_custom_call.1} parent=1 // pred_fallthru
      _
    // Predicated region
    $region22: #{tpu_custom_call.1} parent=1 // pred_check
      _
    $region23: #{tpu_custom_call.1} parent=1 // pred_check_branch
      %68 = sbr.rel (0) target = $region25
    $region24: #{tpu_custom_call.1} parent=1 // pred_region
      %70 = dma.done [#allocation6], 512
    $region25: #{tpu_custom_call.1} parent=1 // pred_fallthru
      _
    // Predicated region
    $region26: #{tpu_custom_call.1} parent=1 // pred_check
      _
    $region27: #{tpu_custom_call.1} parent=1 // pred_check_branch
      %72 = sbr.rel (0) target = $region29
    $region28: #{tpu_custom_call.1} parent=1 // pred_region
      %74 = dma.done [#allocation6], 2688
    $region29: #{tpu_custom_call.1} parent=1 // pred_fallthru
      _
    // Predicated region
    $region30: #{tpu_custom_call.1} parent=1 // pred_check
      _
    $region31: #{tpu_custom_call.1} parent=1 // pred_check_branch
      %76 = sbr.rel (0) target = $region33
    $region32: #{tpu_custom_call.1} parent=1 // pred_region
      %78 = dma.done [#allocation9], 128
    $region33: #{tpu_custom_call.1} parent=1 // pred_fallthru
      _
    %v80 = vld [vmem:[#allocation2] sm:$0xff]
    %v81 = vld [vmem:[#allocation2 + $0x8] sm:$0xff]
    %v82 = vld [vmem:[#allocation2 + $0x10] sm:$0xff]
    %v83 = vld [vmem:[#allocation2 + $0x18] sm:$0xff]
    %v84 = vld [vmem:[#allocation2 + $0x20] sm:$0xff]
    %v85 = vld [vmem:[#allocation2 + $0x28] sm:$0xff]
    %v86 = vld [vmem:[#allocation2 + $0x30] sm:$0xff]
    %v87 = vld [vmem:[#allocation2 + $0x38] sm:$0xff]
    %v88 = vld [vmem:[#allocation5] sm:$0xf]
    %v89 = vld [vmem:[#allocation5 + $0x4] sm:$0xf]
    %v90 = vld [vmem:[#allocation5 + $0x8] sm:$0xf]
    %v91 = vld [vmem:[#allocation5 + $0xc] sm:$0xf]
    %v92 = vld [vmem:[#allocation5 + $0x10] sm:$0xf]
    %v93 = vld [vmem:[#allocation5 + $0x14] sm:$0xf]
    %v94 = vld [vmem:[#allocation5 + $0x18] sm:$0xf]
    %v95 = vld [vmem:[#allocation5 + $0x1c] sm:$0xf]
    %v96 = vld [vmem:[#allocation8] sm:$0xff]
    %v97 = vld [vmem:[#allocation7] sm:$0xf]
    %v98 = vld [vmem:[#allocation7 + $0x4] sm:$0xf]
    %v99 = vld [vmem:[#allocation7 + $0x8] sm:$0xf]
    %v100 = vld [vmem:[#allocation7 + $0xc] sm:$0xf]
    %v101 = vld [vmem:[#allocation7 + $0x10] sm:$0xf]
    %v102 = vld [vmem:[#allocation7 + $0x14] sm:$0xf]
    %v103 = vld [vmem:[#allocation7 + $0x18] sm:$0xf]
    %v104 = vld [vmem:[#allocation7 + $0x1c] sm:$0xf]
    %v105 = vld [vmem:[#allocation7 + $0x20] sm:$0xf]
    %v106 = vld [vmem:[#allocation7 + $0x24] sm:$0xf]
    %v107 = vld [vmem:[#allocation7 + $0x28] sm:$0xf]
    %v108 = vld [vmem:[#allocation7 + $0x2c] sm:$0xf]
    %v109 = vld [vmem:[#allocation7 + $0x30] sm:$0xf]
    %v110 = vld [vmem:[#allocation7 + $0x34] sm:$0xf]
    %v111 = vld [vmem:[#allocation7 + $0x38] sm:$0xf]
    %v112 = vld [vmem:[#allocation7 + $0x3c] sm:$0xf]
    %v113 = vpack.c.bf16 %v81, %v80
    %v114 = vpack.c.bf16 %v83, %v82
    %v115 = vpack.c.bf16 %v85, %v84
    %v116 = vpack.c.bf16 %v87, %v86
    %v133 = vunpack.c.l.b16 %v97
    %v134 = vunpack.c.l.b16 %v98
    %v135 = vunpack.c.l.b16 %v99
    %v136 = vunpack.c.l.b16 %v100
    %v137 = vunpack.c.l.b16 %v101
    %v138 = vunpack.c.l.b16 %v102
    %v139 = vunpack.c.l.b16 %v103
    %v140 = vunpack.c.l.b16 %v104
    %v141 = vunpack.c.l.b16 %v105
    %v142 = vunpack.c.l.b16 %v106
    %v143 = vunpack.c.l.b16 %v107
    %v144 = vunpack.c.l.b16 %v108
    %v145 = vunpack.c.l.b16 %v109
    %v146 = vunpack.c.l.b16 %v110
    %v147 = vunpack.c.l.b16 %v111
    %v148 = vunpack.c.l.b16 %v112
    %v149 = vpack.c.b16 %v134, %v133
    %v150 = vpack.c.b16 %v136, %v135
    %v151 = vpack.c.b16 %v138, %v137
    %v152 = vpack.c.b16 %v140, %v139
    %v153 = vpack.c.b16 %v142, %v141
    %v154 = vpack.c.b16 %v144, %v143
    %v155 = vpack.c.b16 %v146, %v145
    %v156 = vpack.c.b16 %v148, %v147
    %165 = vmatpush.bf16.msra.mxu0 %v156
    %166 = vmatpush.bf16.msra.mxu0 %v155
    %167 = vmatpush.bf16.msra.mxu0 %v154
    %168 = vmatpush.bf16.msra.mxu0 %v153
    %169 = vmatpush.bf16.msra.mxu0 %v152
    %170 = vmatpush.bf16.msra.mxu0 %v151
    %171 = vmatpush.bf16.msra.mxu0 %v150
    %172 = vmatpush.bf16.msra.mxu0 %v149
    %173 = vmatmul.bf16.gmra.mxu0 %v113
    %v174 = vpop.f32.mrf.mxu0
    %v175 = vadd.f32 0.0, %v174
    %v176 = vpop.f32.mrf.mxu0
    %v177 = vadd.f32 0.0, %v176
    %178 = vmatmul.bf16.gmra.mxu0 %v114
    %v179 = vpop.f32.mrf.mxu0
    %v180 = vadd.f32 0.0, %v179
    %v181 = vpop.f32.mrf.mxu0
    %v182 = vadd.f32 0.0, %v181
    %183 = vmatmul.bf16.gmra.mxu0 %v115
    %v184 = vpop.f32.mrf.mxu0
    %v185 = vadd.f32 0.0, %v184
    %v186 = vpop.f32.mrf.mxu0
    %v187 = vadd.f32 0.0, %v186
    %188 = vmatmul.bf16.gmra.mxu0 %v116
    %v189 = vpop.f32.mrf.mxu0
    %v190 = vadd.f32 0.0, %v189
    %v191 = vpop.f32.mrf.mxu0
    %v192 = vadd.f32 0.0, %v191
    %193 = vdwg.mxu0
    %v194 = vperm.slane %v96, 0
    %v195 = vadd.f32 %v175, %v194
    %v196 = vadd.f32 %v177, %v194
    %v197 = vadd.f32 %v180, %v194
    %v198 = vadd.f32 %v182, %v194
    %v199 = vadd.f32 %v185, %v194
    %v200 = vadd.f32 %v187, %v194
    %v201 = vadd.f32 %v190, %v194
    %v202 = vadd.f32 %v192, %v194
    %v203 = vld [vmem:[#allocation7 + $0x40] sm:$0xf]
    %v204 = vld [vmem:[#allocation7 + $0x44] sm:$0xf]
    %v205 = vld [vmem:[#allocation7 + $0x48] sm:$0xf]
    %v206 = vld [vmem:[#allocation7 + $0x4c] sm:$0xf]
    %v207 = vpack.c.bf16 %v196, %v195
    %v208 = vpack.c.bf16 %v198, %v197
    %v209 = vpack.c.bf16 %v200, %v199
    %v210 = vpack.c.bf16 %v202, %v201
    %v215 = vunpack.c.l.b16 %v203
    %v216 = vunpack.c.l.b16 %v204
    %v217 = vunpack.c.l.b16 %v205
    %v218 = vunpack.c.l.b16 %v206
    %v219 = vpack.c.b16 %v216, %v215
    %v220 = vpack.c.b16 %v218, %v217
    %vm223 = vcmask 261120
    %v225 = vsel %vm223, %v207, 0
    %v228 = vsel %vm223, %v208, 0
    %v231 = vsel %vm223, %v209, 0
    %v234 = vsel %vm223, %v210, 0
    %236 = vmatpush.bf16.msra.mxu0 0
    %237 = vmatpush.bf16.msra.mxu0 0
    %238 = vmatpush.bf16.msra.mxu0 0
    %239 = vmatpush.bf16.msra.mxu0 0
    %240 = vmatpush.bf16.msra.mxu0 0
    %241 = vmatpush.bf16.msra.mxu0 0
    %242 = vmatpush.bf16.msra.mxu0 %v220
    %243 = vmatpush.bf16.msra.mxu0 %v219
    %244 = vmatmul.bf16.gmra.mxu0 %v225
    %v245 = vpop.f32.mrf.mxu0
    %v246 = vadd.f32 0.0, %v245
    %v247 = vpop.f32.mrf.mxu0
    %v248 = vadd.f32 0.0, %v247
    %249 = vmatmul.bf16.gmra.mxu0 %v228
    %v250 = vpop.f32.mrf.mxu0
    %v251 = vadd.f32 0.0, %v250
    %v252 = vpop.f32.mrf.mxu0
    %v253 = vadd.f32 0.0, %v252
    %254 = vmatmul.bf16.gmra.mxu0 %v231
    %v255 = vpop.f32.mrf.mxu0
    %v256 = vadd.f32 0.0, %v255
    %v257 = vpop.f32.mrf.mxu0
    %v258 = vadd.f32 0.0, %v257
    %259 = vmatmul.bf16.gmra.mxu0 %v234
    %v260 = vpop.f32.mrf.mxu0
    %v261 = vadd.f32 0.0, %v260
    %v262 = vpop.f32.mrf.mxu0
    %v263 = vadd.f32 0.0, %v262
    %264 = vdwg.mxu0
    %v265 = vpack.c.bf16 %v248, %v246
    %v266 = vpack.c.bf16 %v253, %v251
    %v267 = vpack.c.bf16 %v258, %v256
    %v268 = vpack.c.bf16 %v263, %v261
    %v277 = vunpack.c.l.b16 %v88
    %v278 = vunpack.c.l.b16 %v89
    %v279 = vunpack.c.l.b16 %v90
    %v280 = vunpack.c.l.b16 %v91
    %v281 = vunpack.c.l.b16 %v92
    %v282 = vunpack.c.l.b16 %v93
    %v283 = vunpack.c.l.b16 %v94
    %v284 = vunpack.c.l.b16 %v95
    %v285 = vpack.c.b16 %v278, %v277
    %v286 = vpack.c.b16 %v280, %v279
    %v287 = vpack.c.b16 %v282, %v281
    %v288 = vpack.c.b16 %v284, %v283
    %297 = vrot.lane.b32.xlu0 %v246, 96
    %v298 = vpop.permute.xlu0 %297
    %299 = vrot.lane.b32.xlu0 %v248, 96
    %v300 = vpop.permute.xlu0 %299
    %301 = vrot.lane.b32.xlu0 %v251, 96
    %v302 = vpop.permute.xlu0 %301
    %303 = vrot.lane.b32.xlu0 %v253, 96
    %v304 = vpop.permute.xlu0 %303
    %305 = vrot.lane.b32.xlu0 %v256, 96
    %v306 = vpop.permute.xlu0 %305
    %307 = vrot.lane.b32.xlu0 %v258, 96
    %v308 = vpop.permute.xlu0 %307
    %309 = vrot.lane.b32.xlu0 %v261, 96
    %v310 = vpop.permute.xlu0 %309
    %311 = vrot.lane.b32.xlu0 %v263, 96
    %v312 = vpop.permute.xlu0 %311
    %vm321 = vcmask 523264
    %v323 = vsel %vm321, %v285, 0
    %v326 = vsel %vm321, %v286, 0
    %v329 = vsel %vm321, %v287, 0
    %v332 = vsel %vm321, %v288, 0
    %334 = vmatpush.bf16.msra.mxu0 0
    %335 = vmatpush.bf16.msra.mxu0 0
    %336 = vmatpush.bf16.msra.mxu0 0
    %337 = vmatpush.bf16.msra.mxu0 0
    %338 = vmatpush.bf16.msra.mxu0 %v268
    %339 = vmatpush.bf16.msra.mxu0 %v267
    %340 = vmatpush.bf16.msra.mxu0 %v266
    %341 = vmatpush.bf16.msra.mxu0 %v265
    %342 = vmatmul.bf16.gmra.mxu0 %v323
    %v343 = vpop.f32.mrf.mxu0
    %v344 = vadd.f32 %v298, %v343
    %v345 = vpop.f32.mrf.mxu0
    %v346 = vadd.f32 %v300, %v345
    %347 = vmatmul.bf16.gmra.mxu0 %v326
    %v348 = vpop.f32.mrf.mxu0
    %v349 = vadd.f32 %v302, %v348
    %v350 = vpop.f32.mrf.mxu0
    %v351 = vadd.f32 %v304, %v350
    %352 = vmatmul.bf16.gmra.mxu0 %v329
    %v353 = vpop.f32.mrf.mxu0
    %v354 = vadd.f32 %v306, %v353
    %v355 = vpop.f32.mrf.mxu0
    %v356 = vadd.f32 %v308, %v355
    %357 = vmatmul.bf16.gmra.mxu0 %v332
    %v358 = vpop.f32.mrf.mxu0
    %v359 = vadd.f32 %v310, %v358
    %v360 = vpop.f32.mrf.mxu0
    %v361 = vadd.f32 %v312, %v360
    %362 = vdwg.mxu0
    %v363 = vperm.slane %v96, 1
    %v364 = vadd.f32 %v344, %v363
    %v365 = vadd.f32 %v346, %v363
    %v366 = vadd.f32 %v349, %v363
    %v367 = vadd.f32 %v351, %v363
    %v368 = vadd.f32 %v354, %v363
    %v369 = vadd.f32 %v356, %v363
    %v370 = vadd.f32 %v359, %v363
    %v371 = vadd.f32 %v361, %v363
    %v372 = vmax.f32 %v364, 0.0
    %v373 = vmax.f32 %v365, 0.0
    %v374 = vmax.f32 %v366, 0.0
    %v375 = vmax.f32 %v367, 0.0
    %v376 = vmax.f32 %v368, 0.0
    %v377 = vmax.f32 %v369, 0.0
    %v378 = vmax.f32 %v370, 0.0
    %v379 = vmax.f32 %v371, 0.0
    %v380 = vld [vmem:[#allocation7 + $0x50] sm:$0xf]
    %v381 = vld [vmem:[#allocation7 + $0x54] sm:$0xf]
    %v382 = vld [vmem:[#allocation7 + $0x58] sm:$0xf]
    %v383 = vld [vmem:[#allocation7 + $0x5c] sm:$0xf]
    %v384 = vpack.c.bf16 %v373, %v372
    %v385 = vpack.c.bf16 %v375, %v374
    %v386 = vpack.c.bf16 %v377, %v376
    %v387 = vpack.c.bf16 %v379, %v378
    %v392 = vunpack.c.l.b16 %v380
    %v393 = vunpack.c.l.b16 %v381
    %v394 = vunpack.c.l.b16 %v382
    %v395 = vunpack.c.l.b16 %v383
    %v396 = vpack.c.b16 %v393, %v392
    %v397 = vpack.c.b16 %v395, %v394
    %v401 = vsel %vm223, %v384, 0
    %v404 = vsel %vm223, %v385, 0
    %v407 = vsel %vm223, %v386, 0
    %v410 = vsel %vm223, %v387, 0
    %412 = vmatpush.bf16.msra.mxu0 0
    %413 = vmatpush.bf16.msra.mxu0 0
    %414 = vmatpush.bf16.msra.mxu0 0
    %415 = vmatpush.bf16.msra.mxu0 0
    %416 = vmatpush.bf16.msra.mxu0 0
    %417 = vmatpush.bf16.msra.mxu0 0
    %418 = vmatpush.bf16.msra.mxu0 %v397
    %419 = vmatpush.bf16.msra.mxu0 %v396
    %420 = vmatmul.bf16.gmra.mxu0 %v401
    %v421 = vpop.f32.mrf.mxu0
    %v422 = vadd.f32 0.0, %v421
    %v423 = vpop.f32.mrf.mxu0
    %v424 = vadd.f32 0.0, %v423
    %425 = vmatmul.bf16.gmra.mxu0 %v404
    %v426 = vpop.f32.mrf.mxu0
    %v427 = vadd.f32 0.0, %v426
    %v428 = vpop.f32.mrf.mxu0
    %v429 = vadd.f32 0.0, %v428
    %430 = vmatmul.bf16.gmra.mxu0 %v407
    %v431 = vpop.f32.mrf.mxu0
    %v432 = vadd.f32 0.0, %v431
    %v433 = vpop.f32.mrf.mxu0
    %v434 = vadd.f32 0.0, %v433
    %435 = vmatmul.bf16.gmra.mxu0 %v410
    %v436 = vpop.f32.mrf.mxu0
    %v437 = vadd.f32 0.0, %v436
    %v438 = vpop.f32.mrf.mxu0
    %v439 = vadd.f32 0.0, %v438
    %440 = vdwg.mxu0
    %v441 = vperm.slane %v96, 2
    %v442 = vadd.f32 %v422, %v441
    %v443 = vadd.f32 %v424, %v441
    %v444 = vadd.f32 %v427, %v441
    %v445 = vadd.f32 %v429, %v441
    %v446 = vadd.f32 %v432, %v441
    %v447 = vadd.f32 %v434, %v441
    %v448 = vadd.f32 %v437, %v441
    %v449 = vadd.f32 %v439, %v441
    %vm450 = vcmp.gt.f32.partialorder %v442, 0.0
    %vm451 = vcmp.gt.f32.partialorder %v443, 0.0
    %vm452 = vcmp.gt.f32.partialorder %v444, 0.0
    %vm453 = vcmp.gt.f32.partialorder %v445, 0.0
    %vm454 = vcmp.gt.f32.partialorder %v446, 0.0
    %vm455 = vcmp.gt.f32.partialorder %v447, 0.0
    %vm456 = vcmp.gt.f32.partialorder %v448, 0.0
    %vm457 = vcmp.gt.f32.partialorder %v449, 0.0
    %v458 = vmul.f32 %v442, 0.01
    %v459 = vmul.f32 %v443, 0.01
    %v460 = vmul.f32 %v444, 0.01
    %v461 = vmul.f32 %v445, 0.01
    %v462 = vmul.f32 %v446, 0.01
    %v463 = vmul.f32 %v447, 0.01
    %v464 = vmul.f32 %v448, 0.01
    %v465 = vmul.f32 %v449, 0.01
    %v466 = vsel %vm450, %v442, %v458
    %v467 = vsel %vm451, %v443, %v459
    %v468 = vsel %vm452, %v444, %v460
    %v469 = vsel %vm453, %v445, %v461
    %v470 = vsel %vm454, %v446, %v462
    %v471 = vsel %vm455, %v447, %v463
    %v472 = vsel %vm456, %v448, %v464
    %v473 = vsel %vm457, %v449, %v465
    %v474 = vld [vmem:[#allocation7 + $0x60] sm:$0xf]
    %v475 = vld [vmem:[#allocation7 + $0x64] sm:$0xf]
    %v476 = vld [vmem:[#allocation7 + $0x68] sm:$0xf]
    %v477 = vld [vmem:[#allocation7 + $0x6c] sm:$0xf]
    %v478 = vpack.c.bf16 %v467, %v466
    %v479 = vpack.c.bf16 %v469, %v468
    %v480 = vpack.c.bf16 %v471, %v470
    %v481 = vpack.c.bf16 %v473, %v472
    %v486 = vunpack.c.l.b16 %v474
    %v487 = vunpack.c.l.b16 %v475
    %v488 = vunpack.c.l.b16 %v476
    %v489 = vunpack.c.l.b16 %v477
    %v490 = vpack.c.b16 %v487, %v486
    %v491 = vpack.c.b16 %v489, %v488
    %v495 = vsel %vm223, %v478, 0
    %v498 = vsel %vm223, %v479, 0
    %v501 = vsel %vm223, %v480, 0
    %v504 = vsel %vm223, %v481, 0
    %506 = vmatpush.bf16.msra.mxu0 0
    %507 = vmatpush.bf16.msra.mxu0 0
    %508 = vmatpush.bf16.msra.mxu0 0
    %509 = vmatpush.bf16.msra.mxu0 0
    %510 = vmatpush.bf16.msra.mxu0 0
    %511 = vmatpush.bf16.msra.mxu0 0
    %512 = vmatpush.bf16.msra.mxu0 %v491
    %513 = vmatpush.bf16.msra.mxu0 %v490
    %514 = vmatmul.bf16.gmra.mxu0 %v495
    %v515 = vpop.f32.mrf.mxu0
    %v516 = vadd.f32 0.0, %v515
    %v517 = vpop.f32.mrf.mxu0
    %v518 = vadd.f32 0.0, %v517
    %519 = vmatmul.bf16.gmra.mxu0 %v498
    %v520 = vpop.f32.mrf.mxu0
    %v521 = vadd.f32 0.0, %v520
    %v522 = vpop.f32.mrf.mxu0
    %v523 = vadd.f32 0.0, %v522
    %524 = vmatmul.bf16.gmra.mxu0 %v501
    %v525 = vpop.f32.mrf.mxu0
    %v526 = vadd.f32 0.0, %v525
    %v527 = vpop.f32.mrf.mxu0
    %v528 = vadd.f32 0.0, %v527
    %529 = vmatmul.bf16.gmra.mxu0 %v504
    %v530 = vpop.f32.mrf.mxu0
    %v531 = vadd.f32 0.0, %v530
    %v532 = vpop.f32.mrf.mxu0
    %v533 = vadd.f32 0.0, %v532
    %534 = vdwg.mxu0
    %v535 = vpack.c.bf16 %v518, %v516
    %v536 = vpack.c.bf16 %v523, %v521
    %v537 = vpack.c.bf16 %v528, %v526
    %v538 = vpack.c.bf16 %v533, %v531
    %547 = vrot.lane.b32.xlu0 %v516, 96
    %v548 = vpop.permute.xlu0 %547
    %549 = vrot.lane.b32.xlu0 %v518, 96
    %v550 = vpop.permute.xlu0 %549
    %551 = vrot.lane.b32.xlu0 %v521, 96
    %v552 = vpop.permute.xlu0 %551
    %553 = vrot.lane.b32.xlu0 %v523, 96
    %v554 = vpop.permute.xlu0 %553
    %555 = vrot.lane.b32.xlu0 %v526, 96
    %v556 = vpop.permute.xlu0 %555
    %557 = vrot.lane.b32.xlu0 %v528, 96
    %v558 = vpop.permute.xlu0 %557
    %559 = vrot.lane.b32.xlu0 %v531, 96
    %v560 = vpop.permute.xlu0 %559
    %561 = vrot.lane.b32.xlu0 %v533, 96
    %v562 = vpop.permute.xlu0 %561
    %571 = vmatpush.bf16.msra.mxu0 0
    %572 = vmatpush.bf16.msra.mxu0 0
    %573 = vmatpush.bf16.msra.mxu0 0
    %574 = vmatpush.bf16.msra.mxu0 0
    %575 = vmatpush.bf16.msra.mxu0 %v538
    %576 = vmatpush.bf16.msra.mxu0 %v537
    %577 = vmatpush.bf16.msra.mxu0 %v536
    %578 = vmatpush.bf16.msra.mxu0 %v535
    %579 = vmatmul.bf16.gmra.mxu0 %v323
    %v580 = vpop.f32.mrf.mxu0
    %v581 = vadd.f32 %v548, %v580
    %v582 = vpop.f32.mrf.mxu0
    %v583 = vadd.f32 %v550, %v582
    %584 = vmatmul.bf16.gmra.mxu0 %v326
    %v585 = vpop.f32.mrf.mxu0
    %v586 = vadd.f32 %v552, %v585
    %v587 = vpop.f32.mrf.mxu0
    %v588 = vadd.f32 %v554, %v587
    %589 = vmatmul.bf16.gmra.mxu0 %v329
    %v590 = vpop.f32.mrf.mxu0
    %v591 = vadd.f32 %v556, %v590
    %v592 = vpop.f32.mrf.mxu0
    %v593 = vadd.f32 %v558, %v592
    %594 = vmatmul.bf16.gmra.mxu0 %v332
    %v595 = vpop.f32.mrf.mxu0
    %v596 = vadd.f32 %v560, %v595
    %v597 = vpop.f32.mrf.mxu0
    %v598 = vadd.f32 %v562, %v597
    %599 = vdwg.mxu0
    %v600 = vperm.slane %v96, 3
    %v601 = vadd.f32 %v581, %v600
    %v602 = vadd.f32 %v583, %v600
    %v603 = vadd.f32 %v586, %v600
    %v604 = vadd.f32 %v588, %v600
    %v605 = vadd.f32 %v591, %v600
    %v606 = vadd.f32 %v593, %v600
    %v607 = vadd.f32 %v596, %v600
    %v608 = vadd.f32 %v598, %v600
    %v609 = vmax.f32 %v601, 0.0
    %v610 = vmax.f32 %v602, 0.0
    %v611 = vmax.f32 %v603, 0.0
    %v612 = vmax.f32 %v604, 0.0
    %v613 = vmax.f32 %v605, 0.0
    %v614 = vmax.f32 %v606, 0.0
    %v615 = vmax.f32 %v607, 0.0
    %v616 = vmax.f32 %v608, 0.0
    %v617 = vld [vmem:[#allocation7 + $0x70] sm:$0xf]
    %v618 = vld [vmem:[#allocation7 + $0x74] sm:$0xf]
    %v619 = vld [vmem:[#allocation7 + $0x78] sm:$0xf]
    %v620 = vld [vmem:[#allocation7 + $0x7c] sm:$0xf]
    %v621 = vpack.c.bf16 %v610, %v609
    %v622 = vpack.c.bf16 %v612, %v611
    %v623 = vpack.c.bf16 %v614, %v613
    %v624 = vpack.c.bf16 %v616, %v615
    %v629 = vunpack.c.l.b16 %v617
    %v630 = vunpack.c.l.b16 %v618
    %v631 = vunpack.c.l.b16 %v619
    %v632 = vunpack.c.l.b16 %v620
    %v633 = vpack.c.b16 %v630, %v629
    %v634 = vpack.c.b16 %v632, %v631
    %v638 = vsel %vm223, %v621, 0
    %v641 = vsel %vm223, %v622, 0
    %v644 = vsel %vm223, %v623, 0
    %v647 = vsel %vm223, %v624, 0
    %649 = vmatpush.bf16.msra.mxu0 0
    %650 = vmatpush.bf16.msra.mxu0 0
    %651 = vmatpush.bf16.msra.mxu0 0
    %652 = vmatpush.bf16.msra.mxu0 0
    %653 = vmatpush.bf16.msra.mxu0 0
    %654 = vmatpush.bf16.msra.mxu0 0
    %655 = vmatpush.bf16.msra.mxu0 %v634
    %656 = vmatpush.bf16.msra.mxu0 %v633
    %657 = vmatmul.bf16.gmra.mxu0 %v638
    %v658 = vpop.f32.mrf.mxu0
    %v659 = vadd.f32 0.0, %v658
    %v660 = vpop.f32.mrf.mxu0
    %v661 = vadd.f32 0.0, %v660
    %662 = vmatmul.bf16.gmra.mxu0 %v641
    %v663 = vpop.f32.mrf.mxu0
    %v664 = vadd.f32 0.0, %v663
    %v665 = vpop.f32.mrf.mxu0
    %v666 = vadd.f32 0.0, %v665
    %667 = vmatmul.bf16.gmra.mxu0 %v644
    %v668 = vpop.f32.mrf.mxu0
    %v669 = vadd.f32 0.0, %v668
    %v670 = vpop.f32.mrf.mxu0
    %v671 = vadd.f32 0.0, %v670
    %672 = vmatmul.bf16.gmra.mxu0 %v647
    %v673 = vpop.f32.mrf.mxu0
    %v674 = vadd.f32 0.0, %v673
    %v675 = vpop.f32.mrf.mxu0
    %v676 = vadd.f32 0.0, %v675
    %677 = vdwg.mxu0
    %v678 = vperm.slane %v96, 4
    %v679 = vadd.f32 %v659, %v678
    %v680 = vadd.f32 %v661, %v678
    %v681 = vadd.f32 %v664, %v678
    %v682 = vadd.f32 %v666, %v678
    %v683 = vadd.f32 %v669, %v678
    %v684 = vadd.f32 %v671, %v678
    %v685 = vadd.f32 %v674, %v678
    %v686 = vadd.f32 %v676, %v678
    %vm687 = vcmp.gt.f32.partialorder %v679, 0.0
    %vm688 = vcmp.gt.f32.partialorder %v680, 0.0
    %vm689 = vcmp.gt.f32.partialorder %v681, 0.0
    %vm690 = vcmp.gt.f32.partialorder %v682, 0.0
    %vm691 = vcmp.gt.f32.partialorder %v683, 0.0
    %vm692 = vcmp.gt.f32.partialorder %v684, 0.0
    %vm693 = vcmp.gt.f32.partialorder %v685, 0.0
    %vm694 = vcmp.gt.f32.partialorder %v686, 0.0
    %v695 = vmul.f32 %v679, 0.01
    %v696 = vmul.f32 %v680, 0.01
    %v697 = vmul.f32 %v681, 0.01
    %v698 = vmul.f32 %v682, 0.01
    %v699 = vmul.f32 %v683, 0.01
    %v700 = vmul.f32 %v684, 0.01
    %v701 = vmul.f32 %v685, 0.01
    %v702 = vmul.f32 %v686, 0.01
    %v703 = vsel %vm687, %v679, %v695
    %v704 = vsel %vm688, %v680, %v696
    %v705 = vsel %vm689, %v681, %v697
    %v706 = vsel %vm690, %v682, %v698
    %v707 = vsel %vm691, %v683, %v699
    %v708 = vsel %vm692, %v684, %v700
    %v709 = vsel %vm693, %v685, %v701
    %v710 = vsel %vm694, %v686, %v702
    %v711 = vld [vmem:[#allocation7 + $0x80] sm:$0xf]
    %v712 = vld [vmem:[#allocation7 + $0x84] sm:$0xf]
    %v713 = vld [vmem:[#allocation7 + $0x88] sm:$0xf]
    %v714 = vld [vmem:[#allocation7 + $0x8c] sm:$0xf]
    %v715 = vpack.c.bf16 %v704, %v703
    %v716 = vpack.c.bf16 %v706, %v705
    %v717 = vpack.c.bf16 %v708, %v707
    %v718 = vpack.c.bf16 %v710, %v709
    %v723 = vunpack.c.l.b16 %v711
    %v724 = vunpack.c.l.b16 %v712
    %v725 = vunpack.c.l.b16 %v713
    %v726 = vunpack.c.l.b16 %v714
    %v727 = vpack.c.b16 %v724, %v723
    %v728 = vpack.c.b16 %v726, %v725
    %v732 = vsel %vm223, %v715, 0
    %v735 = vsel %vm223, %v716, 0
    %v738 = vsel %vm223, %v717, 0
    %v741 = vsel %vm223, %v718, 0
    %743 = vmatpush.bf16.msra.mxu0 0
    %744 = vmatpush.bf16.msra.mxu0 0
    %745 = vmatpush.bf16.msra.mxu0 0
    %746 = vmatpush.bf16.msra.mxu0 0
    %747 = vmatpush.bf16.msra.mxu0 0
    %748 = vmatpush.bf16.msra.mxu0 0
    %749 = vmatpush.bf16.msra.mxu0 %v728
    %750 = vmatpush.bf16.msra.mxu0 %v727
    %751 = vmatmul.bf16.gmra.mxu0 %v732
    %v752 = vpop.f32.mrf.mxu0
    %v753 = vadd.f32 0.0, %v752
    %v754 = vpop.f32.mrf.mxu0
    %v755 = vadd.f32 0.0, %v754
    %756 = vmatmul.bf16.gmra.mxu0 %v735
    %v757 = vpop.f32.mrf.mxu0
    %v758 = vadd.f32 0.0, %v757
    %v759 = vpop.f32.mrf.mxu0
    %v760 = vadd.f32 0.0, %v759
    %761 = vmatmul.bf16.gmra.mxu0 %v738
    %v762 = vpop.f32.mrf.mxu0
    %v763 = vadd.f32 0.0, %v762
    %v764 = vpop.f32.mrf.mxu0
    %v765 = vadd.f32 0.0, %v764
    %766 = vmatmul.bf16.gmra.mxu0 %v741
    %v767 = vpop.f32.mrf.mxu0
    %v768 = vadd.f32 0.0, %v767
    %v769 = vpop.f32.mrf.mxu0
    %v770 = vadd.f32 0.0, %v769
    %771 = vdwg.mxu0
    %v772 = vpack.c.bf16 %v755, %v753
    %v773 = vpack.c.bf16 %v760, %v758
    %v774 = vpack.c.bf16 %v765, %v763
    %v775 = vpack.c.bf16 %v770, %v768
    %784 = vrot.lane.b32.xlu0 %v753, 112
    %v785 = vpop.permute.xlu0 %784
    %786 = vrot.lane.b32.xlu0 %v755, 112
    %v787 = vpop.permute.xlu0 %786
    %788 = vrot.lane.b32.xlu0 %v758, 112
    %v789 = vpop.permute.xlu0 %788
    %790 = vrot.lane.b32.xlu0 %v760, 112
    %v791 = vpop.permute.xlu0 %790
    %792 = vrot.lane.b32.xlu0 %v763, 112
    %v793 = vpop.permute.xlu0 %792
    %794 = vrot.lane.b32.xlu0 %v765, 112
    %v795 = vpop.permute.xlu0 %794
    %796 = vrot.lane.b32.xlu0 %v768, 112
    %v797 = vpop.permute.xlu0 %796
    %798 = vrot.lane.b32.xlu0 %v770, 112
    %v799 = vpop.permute.xlu0 %798
    %808 = vmatpush.bf16.msra.mxu0 0
    %809 = vmatpush.bf16.msra.mxu0 0
    %810 = vmatpush.bf16.msra.mxu0 0
    %811 = vmatpush.bf16.msra.mxu0 0
    %812 = vmatpush.bf16.msra.mxu0 %v775
    %813 = vmatpush.bf16.msra.mxu0 %v774
    %814 = vmatpush.bf16.msra.mxu0 %v773
    %815 = vmatpush.bf16.msra.mxu0 %v772
    %816 = vmatmul.bf16.gmra.mxu0 %v323
    %v817 = vpop.f32.mrf.mxu0
    %v818 = vadd.f32 %v785, %v817
    %v819 = vpop.f32.mrf.mxu0
    %v820 = vadd.f32 %v787, %v819
    %821 = vmatmul.bf16.gmra.mxu0 %v326
    %v822 = vpop.f32.mrf.mxu0
    %v823 = vadd.f32 %v789, %v822
    %v824 = vpop.f32.mrf.mxu0
    %v825 = vadd.f32 %v791, %v824
    %826 = vmatmul.bf16.gmra.mxu0 %v329
    %v827 = vpop.f32.mrf.mxu0
    %v828 = vadd.f32 %v793, %v827
    %v829 = vpop.f32.mrf.mxu0
    %v830 = vadd.f32 %v795, %v829
    %831 = vmatmul.bf16.gmra.mxu0 %v332
    %v832 = vpop.f32.mrf.mxu0
    %v833 = vadd.f32 %v797, %v832
    %v834 = vpop.f32.mrf.mxu0
    %v835 = vadd.f32 %v799, %v834
    %836 = vdwg.mxu0
    %v837 = vperm.slane %v96, 5
    %v838 = vadd.f32 %v818, %v837
    %v839 = vadd.f32 %v820, %v837
    %v840 = vadd.f32 %v823, %v837
    %v841 = vadd.f32 %v825, %v837
    %v842 = vadd.f32 %v828, %v837
    %v843 = vadd.f32 %v830, %v837
    %v844 = vadd.f32 %v833, %v837
    %v845 = vadd.f32 %v835, %v837
    %v846 = vmax.f32 %v838, 0.0
    %v847 = vmax.f32 %v839, 0.0
    %v848 = vmax.f32 %v840, 0.0
    %v849 = vmax.f32 %v841, 0.0
    %v850 = vmax.f32 %v842, 0.0
    %v851 = vmax.f32 %v843, 0.0
    %v852 = vmax.f32 %v844, 0.0
    %v853 = vmax.f32 %v845, 0.0
    %v854 = vld [vmem:[#allocation7 + $0x90] sm:$0xf]
    %v855 = vld [vmem:[#allocation7 + $0x94] sm:$0xf]
    %v856 = vpack.c.bf16 %v847, %v846
    %v857 = vpack.c.bf16 %v849, %v848
    %v858 = vpack.c.bf16 %v851, %v850
    %v859 = vpack.c.bf16 %v853, %v852
    %v862 = vunpack.c.l.b16 %v854
    %v863 = vunpack.c.l.b16 %v855
    %v864 = vpack.c.b16 %v863, %v862
    %vm866 = vcmask 130048
    %v868 = vsel %vm866, %v856, 0
    %v871 = vsel %vm866, %v857, 0
    %v874 = vsel %vm866, %v858, 0
    %v877 = vsel %vm866, %v859, 0
    %879 = vmatpush.bf16.msra.mxu0 0
    %880 = vmatpush.bf16.msra.mxu0 0
    %881 = vmatpush.bf16.msra.mxu0 0
    %882 = vmatpush.bf16.msra.mxu0 0
    %883 = vmatpush.bf16.msra.mxu0 0
    %884 = vmatpush.bf16.msra.mxu0 0
    %885 = vmatpush.bf16.msra.mxu0 0
    %886 = vmatpush.bf16.msra.mxu0 %v864
    %887 = vmatmul.bf16.gmra.mxu0 %v868
    %v888 = vpop.f32.mrf.mxu0
    %v889 = vadd.f32 0.0, %v888
    %v890 = vpop.f32.mrf.mxu0
    %v891 = vadd.f32 0.0, %v890
    %892 = vmatmul.bf16.gmra.mxu0 %v871
    %v893 = vpop.f32.mrf.mxu0
    %v894 = vadd.f32 0.0, %v893
    %v895 = vpop.f32.mrf.mxu0
    %v896 = vadd.f32 0.0, %v895
    %897 = vmatmul.bf16.gmra.mxu0 %v874
    %v898 = vpop.f32.mrf.mxu0
    %v899 = vadd.f32 0.0, %v898
    %v900 = vpop.f32.mrf.mxu0
    %v901 = vadd.f32 0.0, %v900
    %902 = vmatmul.bf16.gmra.mxu0 %v877
    %v903 = vpop.f32.mrf.mxu0
    %v904 = vadd.f32 0.0, %v903
    %v905 = vpop.f32.mrf.mxu0
    %v906 = vadd.f32 0.0, %v905
    %907 = vdwg.mxu0
    %v908 = vperm.slane %v96, 6
    %v909 = vadd.f32 %v889, %v908
    %v910 = vadd.f32 %v891, %v908
    %v911 = vadd.f32 %v894, %v908
    %v912 = vadd.f32 %v896, %v908
    %v913 = vadd.f32 %v899, %v908
    %v914 = vadd.f32 %v901, %v908
    %v915 = vadd.f32 %v904, %v908
    %v916 = vadd.f32 %v906, %v908
    %vm917 = vcmp.gt.f32.partialorder %v909, 0.0
    %vm918 = vcmp.gt.f32.partialorder %v910, 0.0
    %vm919 = vcmp.gt.f32.partialorder %v911, 0.0
    %vm920 = vcmp.gt.f32.partialorder %v912, 0.0
    %vm921 = vcmp.gt.f32.partialorder %v913, 0.0
    %vm922 = vcmp.gt.f32.partialorder %v914, 0.0
    %vm923 = vcmp.gt.f32.partialorder %v915, 0.0
    %vm924 = vcmp.gt.f32.partialorder %v916, 0.0
    %v925 = vmul.f32 %v909, 0.01
    %v926 = vmul.f32 %v910, 0.01
    %v927 = vmul.f32 %v911, 0.01
    %v928 = vmul.f32 %v912, 0.01
    %v929 = vmul.f32 %v913, 0.01
    %v930 = vmul.f32 %v914, 0.01
    %v931 = vmul.f32 %v915, 0.01
    %v932 = vmul.f32 %v916, 0.01
    %v933 = vsel %vm917, %v909, %v925
    %v934 = vsel %vm918, %v910, %v926
    %v935 = vsel %vm919, %v911, %v927
    %v936 = vsel %vm920, %v912, %v928
    %v937 = vsel %vm921, %v913, %v929
    %v938 = vsel %vm922, %v914, %v930
    %v939 = vsel %vm923, %v915, %v931
    %v940 = vsel %vm924, %v916, %v932
    %v941 = vld [vmem:[#allocation7 + $0x98] sm:$0xf]
    %v942 = vld [vmem:[#allocation7 + $0x9c] sm:$0xf]
    %v943 = vld [vmem:[#allocation7 + $0xa0] sm:$0xf]
    %v944 = vld [vmem:[#allocation7 + $0xa4] sm:$0xf]
    %v945 = vpack.c.bf16 %v934, %v933
    %v946 = vpack.c.bf16 %v936, %v935
    %v947 = vpack.c.bf16 %v938, %v937
    %v948 = vpack.c.bf16 %v940, %v939
    %v949 = vperm.slane %v96, 7
    %951 = vrot.lane.b32.xlu0 %v949, 126
    %v952 = vpop.permute.xlu0 %951
    %v954 = vmul.f32 %v80, %v952
    %v955 = vmul.f32 %v81, %v952
    %v956 = vmul.f32 %v82, %v952
    %v957 = vmul.f32 %v83, %v952
    %v958 = vmul.f32 %v84, %v952
    %v959 = vmul.f32 %v85, %v952
    %v960 = vmul.f32 %v86, %v952
    %v961 = vmul.f32 %v87, %v952
    %963 = vset.pattern.permute.xlu0 126
    %964 = vperm.xlu0 %963, %v954
    %v965 = vpop.permute.xlu0 %964
    %968 = vset.pattern.permute.xlu0 126
    %969 = vperm.xlu0 %968, %v955
    %v970 = vpop.permute.xlu0 %969
    %973 = vset.pattern.permute.xlu0 126
    %974 = vperm.xlu0 %973, %v956
    %v975 = vpop.permute.xlu0 %974
    %978 = vset.pattern.permute.xlu0 126
    %979 = vperm.xlu0 %978, %v957
    %v980 = vpop.permute.xlu0 %979
    %983 = vset.pattern.permute.xlu0 126
    %984 = vperm.xlu0 %983, %v958
    %v985 = vpop.permute.xlu0 %984
    %988 = vset.pattern.permute.xlu0 126
    %989 = vperm.xlu0 %988, %v959
    %v990 = vpop.permute.xlu0 %989
    %993 = vset.pattern.permute.xlu0 126
    %994 = vperm.xlu0 %993, %v960
    %v995 = vpop.permute.xlu0 %994
    %998 = vset.pattern.permute.xlu0 126
    %999 = vperm.xlu0 %998, %v961
    %v1000 = vpop.permute.xlu0 %999
    %v1006 = vunpack.c.l.b16 %v941
    %v1007 = vunpack.c.l.b16 %v942
    %v1008 = vunpack.c.l.b16 %v943
    %v1009 = vunpack.c.l.b16 %v944
    %v1010 = vpack.c.b16 %v1007, %v1006
    %v1011 = vpack.c.b16 %v1009, %v1008
    %v1015 = vsel %vm223, %v945, 0
    %v1018 = vsel %vm223, %v946, 0
    %v1021 = vsel %vm223, %v947, 0
    %v1024 = vsel %vm223, %v948, 0
    %1026 = vmatpush.bf16.msra.mxu0 0
    %1027 = vmatpush.bf16.msra.mxu0 0
    %1028 = vmatpush.bf16.msra.mxu0 0
    %1029 = vmatpush.bf16.msra.mxu0 0
    %1030 = vmatpush.bf16.msra.mxu0 0
    %1031 = vmatpush.bf16.msra.mxu0 0
    %1032 = vmatpush.bf16.msra.mxu0 %v1011
    %1033 = vmatpush.bf16.msra.mxu0 %v1010
    %1034 = vmatmul.bf16.gmra.mxu0 %v1015
    %v1035 = vpop.f32.mrf.mxu0
    %v1036 = vadd.f32 %v965, %v1035
    %v1037 = vpop.f32.mrf.mxu0
    %v1038 = vadd.f32 %v970, %v1037
    %1039 = vmatmul.bf16.gmra.mxu0 %v1018
    %v1040 = vpop.f32.mrf.mxu0
    %v1041 = vadd.f32 %v975, %v1040
    %v1042 = vpop.f32.mrf.mxu0
    %v1043 = vadd.f32 %v980, %v1042
    %1044 = vmatmul.bf16.gmra.mxu0 %v1021
    %v1045 = vpop.f32.mrf.mxu0
    %v1046 = vadd.f32 %v985, %v1045
    %v1047 = vpop.f32.mrf.mxu0
    %v1048 = vadd.f32 %v990, %v1047
    %1049 = vmatmul.bf16.gmra.mxu0 %v1024
    %v1050 = vpop.f32.mrf.mxu0
    %v1051 = vadd.f32 %v995, %v1050
    %v1052 = vpop.f32.mrf.mxu0
    %v1053 = vadd.f32 %v1000, %v1052
    %1054 = vdwg.mxu0
    %v1056 = vrot.slane %v96, 7
    %1057 = vrot.lane.b32.xlu0 %v1056, 127
    %v1058 = vpop.permute.xlu0 %1057
    %s1059 = vtos %v1058
    %v1060 = vstv %s1059
    %v1062 = vadd.f32 %v1036, %v1060
    %v1063 = vadd.f32 %v1038, %v1060
    %v1064 = vadd.f32 %v1041, %v1060
    %v1065 = vadd.f32 %v1043, %v1060
    %v1066 = vadd.f32 %v1046, %v1060
    %v1067 = vadd.f32 %v1048, %v1060
    %v1068 = vadd.f32 %v1051, %v1060
    %v1069 = vadd.f32 %v1053, %v1060
    %v1070 = vxor.u32 %v1062, 2147483648
    %v1071 = vxor.u32 %v1063, 2147483648
    %v1072 = vxor.u32 %v1064, 2147483648
    %v1073 = vxor.u32 %v1065, 2147483648
    %v1074 = vxor.u32 %v1066, 2147483648
    %v1075 = vxor.u32 %v1067, 2147483648
    %v1076 = vxor.u32 %v1068, 2147483648
    %v1077 = vxor.u32 %v1069, 2147483648
    %v1078 = vmul.f32 %v1070, 1.442695
    %v1079 = vpow.pop %v1078
    %v1080 = vmul.f32 %v1071, 1.442695
    %v1081 = vpow.pop %v1080
    %v1082 = vmul.f32 %v1072, 1.442695
    %v1083 = vpow.pop %v1082
    %v1084 = vmul.f32 %v1073, 1.442695
    %v1085 = vpow.pop %v1084
    %v1086 = vmul.f32 %v1074, 1.442695
    %v1087 = vpow.pop %v1086
    %v1088 = vmul.f32 %v1075, 1.442695
    %v1089 = vpow.pop %v1088
    %v1090 = vmul.f32 %v1076, 1.442695
    %v1091 = vpow.pop %v1090
    %v1092 = vmul.f32 %v1077, 1.442695
    %v1093 = vpow.pop %v1092
    %v1094 = vadd.f32 %v1079, 1.0
    %v1095 = vadd.f32 %v1081, 1.0
    %v1096 = vadd.f32 %v1083, 1.0
    %v1097 = vadd.f32 %v1085, 1.0
    %v1098 = vadd.f32 %v1087, 1.0
    %v1099 = vadd.f32 %v1089, 1.0
    %v1100 = vadd.f32 %v1091, 1.0
    %v1101 = vadd.f32 %v1093, 1.0
    %v1102 = vrcp.pop %v1094
    %v1103 = vmul.f32 %v1094, %v1102
    %v1104 = vsub.f32 1.0, %v1103
    %v1105 = vmul.f32 %v1102, %v1104
    %v1106 = vadd.f32 %v1102, %v1105
    %vm1107 = vweird.f32 %v1094
    %vm1108 = vweird.f32 %v1102
    %vm1109 = vmor %vm1107, %vm1108
    %v1110 = vsel %vm1109, %v1102, %v1106
    %v1111 = vand.u32 2147483647, %v1094
    %vm1112 = vcmp.eq.f32.partialorder %v1111, 8.507059e+37
    %v1113 = vand.u32 %v1094, 2147483648
    %v1114 = vor.u32 1.1754944e-38, %v1113
    %v1115 = vsel %vm1112, %v1114, %v1110
    %v1116 = vmul.f32 1.0, %v1115
    %v1117 = vrcp.pop %v1095
    %v1118 = vmul.f32 %v1095, %v1117
    %v1119 = vsub.f32 1.0, %v1118
    %v1120 = vmul.f32 %v1117, %v1119
    %v1121 = vadd.f32 %v1117, %v1120
    %vm1122 = vweird.f32 %v1095
    %vm1123 = vweird.f32 %v1117
    %vm1124 = vmor %vm1122, %vm1123
    %v1125 = vsel %vm1124, %v1117, %v1121
    %v1126 = vand.u32 2147483647, %v1095
    %vm1127 = vcmp.eq.f32.partialorder %v1126, 8.507059e+37
    %v1128 = vand.u32 %v1095, 2147483648
    %v1129 = vor.u32 1.1754944e-38, %v1128
    %v1130 = vsel %vm1127, %v1129, %v1125
    %v1131 = vmul.f32 1.0, %v1130
    %v1132 = vrcp.pop %v1096
    %v1133 = vmul.f32 %v1096, %v1132
    %v1134 = vsub.f32 1.0, %v1133
    %v1135 = vmul.f32 %v1132, %v1134
    %v1136 = vadd.f32 %v1132, %v1135
    %vm1137 = vweird.f32 %v1096
    %vm1138 = vweird.f32 %v1132
    %vm1139 = vmor %vm1137, %vm1138
    %v1140 = vsel %vm1139, %v1132, %v1136
    %v1141 = vand.u32 2147483647, %v1096
    %vm1142 = vcmp.eq.f32.partialorder %v1141, 8.507059e+37
    %v1143 = vand.u32 %v1096, 2147483648
    %v1144 = vor.u32 1.1754944e-38, %v1143
    %v1145 = vsel %vm1142, %v1144, %v1140
    %v1146 = vmul.f32 1.0, %v1145
    %v1147 = vrcp.pop %v1097
    %v1148 = vmul.f32 %v1097, %v1147
    %v1149 = vsub.f32 1.0, %v1148
    %v1150 = vmul.f32 %v1147, %v1149
    %v1151 = vadd.f32 %v1147, %v1150
    %vm1152 = vweird.f32 %v1097
    %vm1153 = vweird.f32 %v1147
    %vm1154 = vmor %vm1152, %vm1153
    %v1155 = vsel %vm1154, %v1147, %v1151
    %v1156 = vand.u32 2147483647, %v1097
    %vm1157 = vcmp.eq.f32.partialorder %v1156, 8.507059e+37
    %v1158 = vand.u32 %v1097, 2147483648
    %v1159 = vor.u32 1.1754944e-38, %v1158
    %v1160 = vsel %vm1157, %v1159, %v1155
    %v1161 = vmul.f32 1.0, %v1160
    %v1162 = vrcp.pop %v1098
    %v1163 = vmul.f32 %v1098, %v1162
    %v1164 = vsub.f32 1.0, %v1163
    %v1165 = vmul.f32 %v1162, %v1164
    %v1166 = vadd.f32 %v1162, %v1165
    %vm1167 = vweird.f32 %v1098
    %vm1168 = vweird.f32 %v1162
    %vm1169 = vmor %vm1167, %vm1168
    %v1170 = vsel %vm1169, %v1162, %v1166
    %v1171 = vand.u32 2147483647, %v1098
    %vm1172 = vcmp.eq.f32.partialorder %v1171, 8.507059e+37
    %v1173 = vand.u32 %v1098, 2147483648
    %v1174 = vor.u32 1.1754944e-38, %v1173
    %v1175 = vsel %vm1172, %v1174, %v1170
    %v1176 = vmul.f32 1.0, %v1175
    %v1177 = vrcp.pop %v1099
    %v1178 = vmul.f32 %v1099, %v1177
    %v1179 = vsub.f32 1.0, %v1178
    %v1180 = vmul.f32 %v1177, %v1179
    %v1181 = vadd.f32 %v1177, %v1180
    %vm1182 = vweird.f32 %v1099
    %vm1183 = vweird.f32 %v1177
    %vm1184 = vmor %vm1182, %vm1183
    %v1185 = vsel %vm1184, %v1177, %v1181
    %v1186 = vand.u32 2147483647, %v1099
    %vm1187 = vcmp.eq.f32.partialorder %v1186, 8.507059e+37
    %v1188 = vand.u32 %v1099, 2147483648
    %v1189 = vor.u32 1.1754944e-38, %v1188
    %v1190 = vsel %vm1187, %v1189, %v1185
    %v1191 = vmul.f32 1.0, %v1190
    %v1192 = vrcp.pop %v1100
    %v1193 = vmul.f32 %v1100, %v1192
    %v1194 = vsub.f32 1.0, %v1193
    %v1195 = vmul.f32 %v1192, %v1194
    %v1196 = vadd.f32 %v1192, %v1195
    %vm1197 = vweird.f32 %v1100
    %vm1198 = vweird.f32 %v1192
    %vm1199 = vmor %vm1197, %vm1198
    %v1200 = vsel %vm1199, %v1192, %v1196
    %v1201 = vand.u32 2147483647, %v1100
    %vm1202 = vcmp.eq.f32.partialorder %v1201, 8.507059e+37
    %v1203 = vand.u32 %v1100, 2147483648
    %v1204 = vor.u32 1.1754944e-38, %v1203
    %v1205 = vsel %vm1202, %v1204, %v1200
    %v1206 = vmul.f32 1.0, %v1205
    %v1207 = vrcp.pop %v1101
    %v1208 = vmul.f32 %v1101, %v1207
    %v1209 = vsub.f32 1.0, %v1208
    %v1210 = vmul.f32 %v1207, %v1209
    %v1211 = vadd.f32 %v1207, %v1210
    %vm1212 = vweird.f32 %v1101
    %vm1213 = vweird.f32 %v1207
    %vm1214 = vmor %vm1212, %vm1213
    %v1215 = vsel %vm1214, %v1207, %v1211
    %v1216 = vand.u32 2147483647, %v1101
    %vm1217 = vcmp.eq.f32.partialorder %v1216, 8.507059e+37
    %v1218 = vand.u32 %v1101, 2147483648
    %v1219 = vor.u32 1.1754944e-38, %v1218
    %v1220 = vsel %vm1217, %v1219, %v1215
    %v1221 = vmul.f32 1.0, %v1220
    %v1222 = vmul.f32 %v1116, 10.0
    %v1223 = vmul.f32 %v1131, 10.0
    %v1224 = vmul.f32 %v1146, 10.0
    %v1225 = vmul.f32 %v1161, 10.0
    %v1226 = vmul.f32 %v1176, 10.0
    %v1227 = vmul.f32 %v1191, 10.0
    %v1228 = vmul.f32 %v1206, 10.0
    %v1229 = vmul.f32 %v1221, 10.0
    %1231 = vset.pattern.permute.xlu0 127
    %1232 = vperm.xlu0 %1231, %v80
    %v1233 = vpop.permute.xlu0 %1232
    %1236 = vset.pattern.permute.xlu0 127
    %1237 = vperm.xlu0 %1236, %v81
    %v1238 = vpop.permute.xlu0 %1237
    %1241 = vset.pattern.permute.xlu0 127
    %1242 = vperm.xlu0 %1241, %v82
    %v1243 = vpop.permute.xlu0 %1242
    %1246 = vset.pattern.permute.xlu0 127
    %1247 = vperm.xlu0 %1246, %v83
    %v1248 = vpop.permute.xlu0 %1247
    %1251 = vset.pattern.permute.xlu0 127
    %1252 = vperm.xlu0 %1251, %v84
    %v1253 = vpop.permute.xlu0 %1252
    %1256 = vset.pattern.permute.xlu0 127
    %1257 = vperm.xlu0 %1256, %v85
    %v1258 = vpop.permute.xlu0 %1257
    %1261 = vset.pattern.permute.xlu0 127
    %1262 = vperm.xlu0 %1261, %v86
    %v1263 = vpop.permute.xlu0 %1262
    %1266 = vset.pattern.permute.xlu0 127
    %1267 = vperm.xlu0 %1266, %v87
    %v1268 = vpop.permute.xlu0 %1267
    %v1270 = vmul.f32 %v1222, %v1233
    %v1271 = vmul.f32 %v1223, %v1238
    %v1272 = vmul.f32 %v1224, %v1243
    %v1273 = vmul.f32 %v1225, %v1248
    %v1274 = vmul.f32 %v1226, %v1253
    %v1275 = vmul.f32 %v1227, %v1258
    %v1276 = vmul.f32 %v1228, %v1263
    %v1277 = vmul.f32 %v1229, %v1268
    %1278 = vst [vmem:[#allocation10] sm:$0xff] %v1270
    %1279 = vst [vmem:[#allocation10 + $0x8] sm:$0xff] %v1271
    %1280 = vst [vmem:[#allocation10 + $0x10] sm:$0xff] %v1272
    %1281 = vst [vmem:[#allocation10 + $0x18] sm:$0xff] %v1273
    %1282 = vst [vmem:[#allocation10 + $0x20] sm:$0xff] %v1274
    %1283 = vst [vmem:[#allocation10 + $0x28] sm:$0xff] %v1275
    %1284 = vst [vmem:[#allocation10 + $0x30] sm:$0xff] %v1276
    %1285 = vst [vmem:[#allocation10 + $0x38] sm:$0xff] %v1277
    // Predicated region
    $region34: #{tpu_custom_call.1} parent=1 // pred_check
      _
    $region35: #{tpu_custom_call.1} parent=1 // pred_check_branch
      %1287 = sbr.rel (0) target = $region37
    $region36: #{tpu_custom_call.1} parent=1 // pred_region
      %1289 = vsyncadd [#allocation4], 0
      %s1290 = sshll.u32 [#allocation10], 4
      %s1291 = int_to_ptr.vmem [resolvable:$true] %s1290
      %s1292 = sshll.u32 %s4, 4
      %s1293 = int_to_ptr.hbm [resolvable:$true] %s1292
      %1298 = dma.vmem_to_hbm [thread:$0]  %s1291, 1024, %s1293, [#allocation4], 128, 128, 8
    $region37: #{tpu_custom_call.1} parent=1 // pred_fallthru
      _
    // Predicated region
    $region38: #{tpu_custom_call.1} parent=1 // pred_check
      _
    $region39: #{tpu_custom_call.1} parent=1 // pred_check_branch
      %1300 = sbr.rel (0) target = $region41
    $region40: #{tpu_custom_call.1} parent=1 // pred_region
      %1302 = dma.done [#allocation4], 1024
    $region41: #{tpu_custom_call.1} parent=1 // pred_fallthru
      _
    %1303 = vsyncpa [#allocation3], 1
    %1304 = vsyncpa [#allocation6], 1
    %1305 = vsyncpa [#allocation9], 1
    %1306 = vsyncpa [#allocation4], 1

</llo_original>
